<compile_context>
chip_gen: v6e
topology: v6e:2x2x1
jax: 0.10.0
libtpu: 0.0.40
codegen_flags: <defaults>
</compile_context>

<pallas_src>
import jax
import jax.numpy as jnp
from jax.experimental import pallas as pl
from jax.experimental.pallas import tpu as pltpu


_TARGET_TILE_BYTES = 12 * 1024 * 1024  # VMEM footprint per (double-buffered) input tile
_VMEM_LIMIT_BYTES = 32 * 1024 * 1024   # explicit scoped limit: needed on v5e (16 MiB
                                       # default), equal to the v6e/v7x defaults,
                                       # well under v7x's 64 MiB physical VMEM.


def _eval_model_kernel(x_ref, wt_ref, b_ref, o_ref):
    # x_ref : (TB, KD)    input dtype (f32/bf16), VMEM — k batch rows packed per row
    # wt_ref: (k, KD)     f32, VMEM, block-diagonal weight (resident across steps)
    # b_ref : (1,)        f32, SMEM scalar
    # o_ref : (1, k, TB)  f32, VMEM — lane-dense (batch on the 128-lane axis)
    x = x_ref[...].astype(jnp.float32)          # in-kernel upcast (v5e-safe)
    wt = wt_ref[...]
    # (k, KD) . (TB, KD)^T -> (k, TB): batch lands on the lane axis, so the
    # result is already in the lane-dense layout the output block wants
    # (feedback #1 without any (TB,1)->(1,TB) relayout).  Mem-bound kernel, so
    # using the MXU here is free and keeps VPU/XLU idle.
    y = jnp.einsum("kd,nd->kn", wt, x, preferred_element_type=jnp.float32)
    y = y + b_ref[0]                            # scalar bias from SMEM
    z = jnp.exp(-y)                             # EUP
    o_ref[0] = pl.reciprocal(1.0 + z, approx=True)   # EUP approx recip (feedback #8)


def _pick_block_rows(num_rows, row_vmem_bytes):
    """Rows per batch tile.

    ~12 MiB of VMEM per buffer (2x double-buffered fits the 32 MiB scoped limit
    we request), multiple of 8, and capped so the grid has >= 2 steps whenever
    the batch allows (both v7x TensorCores get work on the "parallel" axis).
    """
    if num_rows <= 8:
        return num_rows
    tb = (_TARGET_TILE_BYTES // max(1, row_vmem_bytes)) // 8 * 8
    tb = max(tb, 8)
    # Cap at ceil(num_rows / 2) rounded up to 8 -> at least 2 grid steps.
    half_rows = ((num_rows + 1) // 2 + 7) // 8 * 8
    return min(tb, half_rows)


def evaluation_model_forward(x, weight, bias, *, block_rows=None):
    """sigmoid(x @ weight.T + bias) as a single batch-tiled Pallas kernel.

    Args:
      x:      (B, D) float32 or bfloat16
      weight: (1, D) float32 or bfloat16 (PyTorch nn.Linear layout)
      bias:   (1,)   float32 (or bfloat16)
      block_rows: optional packed-row tile override (multiple of 8, or >= rows).
    Returns:
      (B, 1) float32
    """
    B, D = x.shape
    assert weight.shape == (1, D)

    # ---- Lane packing (feedback #6): k examples per 128-lane row when the ----
    # ---- feature dim divides the lane width and k divides the batch.       ----
    if D <= 128 and 128 % D == 0:
        k = min(128 // D, B & (-B))     # both are powers of two -> min == gcd
    else:
        k = 1
    KD = k * D
    R = B // k
    x_packed = x.reshape(R, KD)         # free row-major reshape, no HBM copy

    # Block-diagonal weight: wt[j, j*D:(j+1)*D] = weight   (tiny, built once).
    w32 = weight.astype(jnp.float32)
    wt = jnp.kron(jnp.eye(k, dtype=jnp.float32), w32)      # (k, KD)
    b_smem = bias.reshape((1,)).astype(jnp.float32)

    # ---- Batch tile sized by VMEM bytes, lane padding included (feedback #2/#3).
    itemsize = jnp.dtype(x.dtype).itemsize
    row_vmem_bytes = ((KD + 127) // 128) * 128 * itemsize
    if block_rows is None:
        block_rows = _pick_block_rows(R, row_vmem_bytes)
    block_rows = min(block_rows, R)
    grid_len = pl.cdiv(R, block_rows)

    out = pl.pallas_call(
        _eval_model_kernel,
        out_shape=jax.ShapeDtypeStruct((grid_len, k, block_rows), jnp.float32),
        grid=(grid_len,),
        in_specs=[
            # Batch-tiled packed input: double-buffered by Pallas across the grid.
            pl.BlockSpec((block_rows, KD), lambda i: (i, 0)),
            # Block-diag weight stays resident (same block every step).
            pl.BlockSpec((k, KD), lambda i: (0, 0)),
            # Scalar bias in SMEM (no VMEM tile padding, no per-step DMA).
            pl.BlockSpec(memory_space=pltpu.MemorySpace.SMEM),
        ],
        # Lane-dense output block: full 128-lane vregs, contiguous HBM writeback.
        out_specs=pl.BlockSpec((1, k, block_rows), lambda i: (i, 0, 0)),
        compiler_params=pltpu.CompilerParams(
            dimension_semantics=("parallel",),  # shards grid across v7x's 2 TCs
            vmem_limit_bytes=_VMEM_LIMIT_BYTES,
        ),
    )(x_packed, wt, b_smem)

    # out[g, j, i] holds example (g*block_rows + i)*k + j; un-permute (tiny).
    out = out.transpose(0, 2, 1).reshape(-1)[:B].reshape(B, 1)
    return out


if __name__ == "__main__":
    key = jax.random.PRNGKey(0)
    kx, kw, kb, kx2, kx3 = jax.random.split(key, 5)

    def _ref(x, w, b):
        xf = x.astype(jnp.float32)
        return jax.nn.sigmoid(
            jnp.sum(xf * w.astype(jnp.float32), axis=-1, keepdims=True)
            + b.astype(jnp.float32))

    # Tolerance covers the EUP approximate reciprocal in the sigmoid epilogue.
    ATOL = RTOL = 5e-3

    # --- Test 1: module-consistent small shape, f32 (batch=8, input_dim=32) ---
    # Exercises lane packing k=4 and the single-tile path.
    B, D = 8, 32
    x = jax.random.normal(kx, (B, D), dtype=jnp.float32)
    bound = 1.0 / (D ** 0.5)  # nn.Linear default init range
    weight = jax.random.uniform(kw, (1, D), minval=-bound, maxval=bound,
                                dtype=jnp.float32)
    bias = jax.random.uniform(kb, (1,), minval=-bound, maxval=bound,
                              dtype=jnp.float32)

    out = jax.block_until_ready(evaluation_model_forward(x, weight, bias))
    assert out.shape == (B, 1)
    assert jnp.allclose(out, _ref(x, weight, bias), atol=ATOL, rtol=RTOL)

    # --- Test 2: bf16 input over HBM, D=128 (k=1), explicit 4-step grid ---
    B2, D2 = 64, 128
    x2 = jax.random.normal(kx2, (B2, D2), dtype=jnp.float32).astype(jnp.bfloat16)
    w2 = jax.random.uniform(kw, (1, D2), minval=-1.0 / D2 ** 0.5,
                            maxval=1.0 / D2 ** 0.5, dtype=jnp.float32)
    b2 = jax.random.uniform(kb, (1,), minval=-1.0 / D2 ** 0.5,
                            maxval=1.0 / D2 ** 0.5, dtype=jnp.float32)

    out2 = jax.block_until_ready(
        evaluation_model_forward(x2, w2, b2, block_rows=16))
    assert out2.shape == (B2, 1)
    assert jnp.allclose(out2, _ref(x2, w2, b2), atol=ATOL, rtol=RTOL)

    # --- Test 3: larger batch, auto tile sizing -> packed, >=2-step grid ---
    B3, D3 = 2048, 32
    x3 = jax.random.normal(kx3, (B3, D3), dtype=jnp.float32)
    out3 = jax.block_until_ready(evaluation_model_forward(x3, weight, bias))
    assert out3.shape == (B3, 1)
    assert jnp.allclose(out3, _ref(x3, weight, bias), atol=ATOL, rtol=RTOL)

    print("KERNEL_OK")
</pallas_src>

<mosaic_0001>
module attributes {stable_mosaic.version = 11 : i64} {
  func.func @_eval_model_kernel(%arg0: i32, %arg1: memref<2x128xf32, #tpu.memory_space<vmem>>, %arg2: memref<4x128xf32, #tpu.memory_space<vmem>>, %arg3: memref<1xf32, #tpu.memory_space<smem>>, %arg4: memref<1x4x2xf32, #tpu.memory_space<vmem>>) attributes {dimension_semantics = [#tpu.dimension_semantics<parallel>], iteration_bounds = array<i64: 1>, scalar_prefetch = 0 : i64, scratch_operands = 0 : i64, tpu.core_type = #tpu.core_type<tc>, window_params = [{transform_indices = @transform_0, window_bounds = array<i64: 2, 128>}, {pipeline_mode = #tpu.pipeline_mode<synchronous>, transform_indices = @transform_1, window_bounds = array<i64: 4, 128>}, {transform_indices = @transform_2, window_bounds = array<i64: 1>}, {transform_indices = @transform_3, window_bounds = array<i64: 1, 4, 2>}]} {
    %c0 = arith.constant 0 : index
    %c0_0 = arith.constant 0 : index
    %0 = vector.load %arg1[%c0, %c0_0] : memref<2x128xf32, #tpu.memory_space<vmem>>, vector<2x128xf32>
    %c0_1 = arith.constant 0 : index
    %c0_2 = arith.constant 0 : index
    %1 = vector.load %arg2[%c0_1, %c0_2] : memref<4x128xf32, #tpu.memory_space<vmem>>, vector<4x128xf32>
    "tpu.trace_start"() <{level = 10 : i32, message = "kd,nd->kn"}> : () -> ()
    %cst = arith.constant dense<0.000000e+00> : vector<4x2xf32>
    %2 = tpu.matmul %1, %0, %cst {dimension_numbers = #tpu.dot_dimension_numbers<[1], [1], [0], [0], [0, 0, 1, 0], [], []>} : vector<4x128xf32>, vector<2x128xf32>, vector<4x2xf32> -> vector<4x2xf32>
    "tpu.trace_stop"() : () -> ()
    %c0_3 = arith.constant 0 : index
    %3 = memref.load %arg3[%c0_3] : memref<1xf32, #tpu.memory_space<smem>>
    %4 = vector.broadcast %3 : f32 to vector<4x2xf32>
    %5 = arith.addf %2, %4 : vector<4x2xf32>
    %cst_4 = arith.constant 0.000000e+00 : f32
    %6 = vector.broadcast %cst_4 : f32 to vector<4x2xf32>
    %7 = arith.subf %6, %5 : vector<4x2xf32>
    %8 = math.exp %7 : vector<4x2xf32>
    %cst_5 = arith.constant 1.000000e+00 : f32
    %9 = vector.broadcast %cst_5 : f32 to vector<4x2xf32>
    %10 = arith.addf %9, %8 : vector<4x2xf32>
    %11 = tpu.reciprocal %10 {approx = true} : vector<4x2xf32> -> vector<4x2xf32>
    %c0_6 = arith.constant 0 : index
    %c0_7 = arith.constant 0 : index
    %c0_8 = arith.constant 0 : index
    %12 = vector.load %arg4[%c0_6, %c0_7, %c0_8] : memref<1x4x2xf32, #tpu.memory_space<vmem>>, vector<1x4x2xf32>
    %13 = vector.shape_cast %12 : vector<1x4x2xf32> to vector<4x2xf32>
    %14 = vector.shape_cast %11 : vector<4x2xf32> to vector<1x4x2xf32>
    tpu.vector_store %arg4[%c0_6, %c0_7, %c0_8], %14 {strides = array<i32>} : memref<1x4x2xf32, #tpu.memory_space<vmem>>, vector<1x4x2xf32>,
    return
  }
  func.func @transform_0(%arg0: i32) -> (i32, i32) {
    %c0_i32 = arith.constant 0 : i32
    %c0_i32_0 = arith.constant 0 : i32
    return %arg0, %c0_i32 : i32, i32
  }
  func.func @transform_1(%arg0: i32) -> (i32, i32) {
    %c0_i32 = arith.constant 0 : i32
    %c0_i32_0 = arith.constant 0 : i32
    %c0_i32_1 = arith.constant 0 : i32
    return %c0_i32, %c0_i32_0 : i32, i32
  }
  func.func @transform_2(%arg0: i32) -> i32 {
    %c0_i32 = arith.constant 0 : i32
    %c0_i32_0 = arith.constant 0 : i32
    return %c0_i32 : i32
  }
  func.func @transform_3(%arg0: i32) -> (i32, i32, i32) {
    %c0_i32 = arith.constant 0 : i32
    %c0_i32_0 = arith.constant 0 : i32
    %c0_i32_1 = arith.constant 0 : i32
    return %arg0, %c0_i32, %c0_i32_0 : i32, i32, i32
  }
}

</mosaic_0001>

<llo_original>
// kernel: tpu_custom_call.1
$region0: #{tpu_custom_call.1}
  #allocation0 [shape = 'u32[]', space=smem, size = 0x4, offset = 0x4, fixed_abs, tag = 'smem constant byte address 0x4 - core index']
  #allocation1 [shape = 'u32[144,128]{1,0:T(1,128)}', space=vmem, size = 0x12000, scoped, tag = 'internal scratch']
  #allocation2 [shape = 'f32[1]{0:T(128)S(6)}', space=smem, size = 0x200, scoped, tag = 'scoped memory for tpu_custom_call.1']
  %s0 = inlined_call_operand.vmem [shape: f32[2,128], index: 0, kind: input, shape index: {}]
  %s1 = inlined_call_operand.hbm [shape: f32[4,128], index: 1, kind: input, shape index: {}]
  %s2 = inlined_call_operand.<no memory space> [shape: f32[1], index: 2, kind: input, shape index: {}]
  %s3 = inlined_call_operand.vmem [shape: f32[1,4,2], index: 3, kind: output, shape index: {}]
  %s4 = sld [smem:[#allocation0]]
  $region26: #{tpu_custom_call.1} parent=0
    _
  %s6 = ssub.s32 1, %s4
  %s7 = scalar_select 0, %s6, %s4
  %8 = sst [smem:[#allocation2]] %s2
  $region1: #{tpu_custom_call.1} parent=0
    #allocation3 [shape = 'u8[2048]{0}', space=vmem, size = 0x800, scoped, tag = 'input window, operand 1, single buffered']
    #allocation4 [shape = 's32[1]{0}', space=sflag, size = 0x4, scoped, tag = 'scoped memory for tpu_custom_call.1']
    %9 = vsyncpa [#allocation4], 0
    // Predicated region
    $region2: #{tpu_custom_call.1} parent=1 // pred_check
      _
    $region3: #{tpu_custom_call.1} parent=1 // pred_check_branch
      %11 = sbr.rel (0) target = $region5
    $region4: #{tpu_custom_call.1} parent=1 // pred_region
      _
    $region5: #{tpu_custom_call.1} parent=1 // pred_fallthru
      _
    // Predicated region
    $region6: #{tpu_custom_call.1} parent=1 // pred_check
      _
    $region7: #{tpu_custom_call.1} parent=1 // pred_check_branch
      %13 = sbr.rel (0) target = $region9
    $region8: #{tpu_custom_call.1} parent=1 // pred_region
      %s15 = ssub.s32 64, 64
      %16 = vsyncadd [#allocation4], %s15
      %s18 = sshll.u32 [#allocation3], 4
      %s19 = int_to_ptr.vmem [resolvable:$true] %s18
      %21 = dma.hbm_to_vmem [thread:$0]  %s1, 64, %s19, [#allocation4]
    $region9: #{tpu_custom_call.1} parent=1 // pred_fallthru
      _
    // Predicated region
    $region10: #{tpu_custom_call.1} parent=1 // pred_check
      _
    $region11: #{tpu_custom_call.1} parent=1 // pred_check_branch
      %23 = sbr.rel (0) target = $region13
    $region12: #{tpu_custom_call.1} parent=1 // pred_region
      _
    $region13: #{tpu_custom_call.1} parent=1 // pred_fallthru
      _
    // Predicated region
    $region14: #{tpu_custom_call.1} parent=1 // pred_check
      _
    $region15: #{tpu_custom_call.1} parent=1 // pred_check_branch
      %25 = sbr.rel (0) target = $region17
    $region16: #{tpu_custom_call.1} parent=1 // pred_region
      %26 = dma.done [#allocation4], 64
    $region17: #{tpu_custom_call.1} parent=1 // pred_fallthru
      _
    %v27 = vld [vmem:[%s0] sm:$0x3]
    %v28 = vld [vmem:[#allocation3] sm:$0xf]
    %s29 = sld [smem:[#allocation2]]
    %v30 = vstv %s29
    %31 = vmatprep.subr.mxu0 0.0
    %32 = vmatpush1.xpose.msra.mxu0 0.0
    %33 = vmatprep.subr.mxu0 0.0
    %34 = vmatpush1.xpose.msra.mxu0 0.0
    %35 = vmatprep.subr.mxu0 0.0
    %36 = vmatpush1.xpose.msra.mxu0 0.0
    %37 = vmatprep.subr.mxu0 0.0
    %38 = vmatpush1.xpose.msra.mxu0 0.0
    %39 = vmatprep.subr.mxu0 0.0
    %40 = vmatpush1.xpose.msra.mxu0 0.0
    %41 = vmatprep.subr.mxu0 0.0
    %42 = vmatpush1.xpose.msra.mxu0 0.0
    %43 = vmatprep.subr.mxu0 0.0
    %44 = vmatpush1.xpose.msra.mxu0 0.0
    %45 = vmatprep.subr.mxu0 0.0
    %46 = vmatpush1.xpose.msra.mxu0 0.0
    %47 = vmatprep.subr.mxu0 0.0
    %48 = vmatpush1.xpose.msra.mxu0 0.0
    %49 = vmatprep.subr.mxu0 0.0
    %50 = vmatpush1.xpose.msra.mxu0 0.0
    %51 = vmatprep.subr.mxu0 0.0
    %52 = vmatpush1.xpose.msra.mxu0 0.0
    %53 = vmatprep.subr.mxu0 0.0
    %54 = vmatpush1.xpose.msra.mxu0 0.0
    %55 = vmatprep.subr.mxu0 0.0
    %56 = vmatpush1.xpose.msra.mxu0 0.0
    %57 = vmatprep.subr.mxu0 0.0
    %58 = vmatpush1.xpose.msra.mxu0 0.0
    %59 = vmatprep.subr.mxu0 0.0
    %60 = vmatpush1.xpose.msra.mxu0 0.0
    %61 = vmatprep.subr.mxu0 0.0
    %62 = vmatpush1.xpose.msra.mxu0 %v27
    %63 = vmatprep.subr.mxu0 0.0
    %64 = vmatpush2.xpose.msra.mxu0 0.0
    %65 = vmatprep.subr.mxu0 0.0
    %66 = vmatpush2.xpose.msra.mxu0 0.0
    %67 = vmatprep.subr.mxu0 0.0
    %68 = vmatpush2.xpose.msra.mxu0 0.0
    %69 = vmatprep.subr.mxu0 0.0
    %70 = vmatpush2.xpose.msra.mxu0 0.0
    %71 = vmatprep.subr.mxu0 0.0
    %72 = vmatpush2.xpose.msra.mxu0 0.0
    %73 = vmatprep.subr.mxu0 0.0
    %74 = vmatpush2.xpose.msra.mxu0 0.0
    %75 = vmatprep.subr.mxu0 0.0
    %76 = vmatpush2.xpose.msra.mxu0 0.0
    %77 = vmatprep.subr.mxu0 0.0
    %78 = vmatpush2.xpose.msra.mxu0 0.0
    %79 = vmatprep.subr.mxu0 0.0
    %80 = vmatpush2.xpose.msra.mxu0 0.0
    %81 = vmatprep.subr.mxu0 0.0
    %82 = vmatpush2.xpose.msra.mxu0 0.0
    %83 = vmatprep.subr.mxu0 0.0
    %84 = vmatpush2.xpose.msra.mxu0 0.0
    %85 = vmatprep.subr.mxu0 0.0
    %86 = vmatpush2.xpose.msra.mxu0 0.0
    %87 = vmatprep.subr.mxu0 0.0
    %88 = vmatpush2.xpose.msra.mxu0 0.0
    %89 = vmatprep.subr.mxu0 0.0
    %90 = vmatpush2.xpose.msra.mxu0 0.0
    %91 = vmatprep.subr.mxu0 0.0
    %92 = vmatpush2.xpose.msra.mxu0 0.0
    %93 = vmatprep.subr.mxu0 0.0
    %94 = vmatpush2.xpose.msra.mxu0 0.0
    %95 = vmatprep.mubr.f32.mxu0 0.0
    %96 = vmatmul.mubr.f32.gmra.mxu0 %v28
    %v97 = vpop.f32.mrf.mxu0
    %v98 = vadd.f32 %v30, %v97
    %v99 = vpop.f32.mrf.mxu0
    %100 = vdwg.mxu0
    %v101 = vsub.f32 0.0, %v98
    %v102 = vmul.f32 %v101, 1.442695
    %v103 = vpow.pop %v102
    %v104 = vadd.f32 %v103, 1.0
    %v105 = vrcp.pop %v104
    %vm106 = vcmask 11264
    %107 = vst.msk [vmem:[%s3] sm:$0xf] %vm106, %v105
    // Predicated region
    $region18: #{tpu_custom_call.1} parent=1 // pred_check
      _
    $region19: #{tpu_custom_call.1} parent=1 // pred_check_branch
      %109 = sbr.rel (0) target = $region21
    $region20: #{tpu_custom_call.1} parent=1 // pred_region
      _
    $region21: #{tpu_custom_call.1} parent=1 // pred_fallthru
      _
    // Predicated region
    $region22: #{tpu_custom_call.1} parent=1 // pred_check
      _
    $region23: #{tpu_custom_call.1} parent=1 // pred_check_branch
      %111 = sbr.rel (0) target = $region25
    $region24: #{tpu_custom_call.1} parent=1 // pred_region
      _
    $region25: #{tpu_custom_call.1} parent=1 // pred_fallthru
      _
    %112 = vsyncpa [#allocation4], 1

</llo_original>
